<compile_context>
chip_gen: v6e
topology: v6e:2x2x1
jax: 0.10.0
libtpu: 0.0.40
codegen_flags: <defaults>
</compile_context>

<pallas_src>
import numpy as np

import jax
import jax.numpy as jnp
from jax import lax
from jax.experimental import pallas as pl
from jax.experimental.pallas import tpu as pltpu


IN_H = IN_W = 13          # input spatial (out_size=192 implies 13x13, C=1)
C1_OUT = 16
C2_OUT = 48
OH1 = OW1 = 6             # (13-3)//2 + 1
OH2 = OW2 = 2             # (6-3)//2 + 1
H1_WIDTH = OH1 * OW1 * C1_OUT    # 576
FLAT = OH2 * OW2 * C2_OUT        # 192  (== BaseEncoder out_size)
TB_MAX = 512              # batch rows per grid step


def _round_up(x, m):
    return (x + m - 1) // m * m


# ----------------------------- Pallas kernel ------------------------------ #
def _fused_encoder_kernel(x_ref, w1_ref, b1_ref, w2_ref, b2_ref,
                          w3_ref, b3_ref, o_ref):
    """conv1 -> relu -> conv2 -> relu -> linear, fully VMEM-resident."""
    x = x_ref[...].astype(jnp.bfloat16)                         # (TB, 169)
    h1 = jnp.dot(x, w1_ref[...], preferred_element_type=jnp.float32)
    h1 = jnp.maximum(h1 + b1_ref[...], 0.0).astype(jnp.bfloat16)  # (TB, 576)
    h2 = jnp.dot(h1, w2_ref[...], preferred_element_type=jnp.float32)
    h2 = jnp.maximum(h2 + b2_ref[...], 0.0).astype(jnp.bfloat16)  # (TB, 192)
    out = jnp.dot(h2, w3_ref[...], preferred_element_type=jnp.float32)
    o_ref[...] = (out + b3_ref[...]).astype(o_ref.dtype)          # (TB, 128+)


# --------------------- one-time parameter preparation ---------------------- #
def init_params(key, emb_dim):
    """Deterministic synthetic parameters in PyTorch layouts."""
    k1, k2, k3, k4, k5, k6 = jax.random.split(key, 6)
    w1 = 0.1 * jax.random.normal(k1, (C1_OUT, 1, 3, 3), jnp.float32)      # (O,C,kh,kw)
    b1 = 0.1 * jax.random.normal(k2, (C1_OUT,), jnp.float32)
    w2 = 0.1 * jax.random.normal(k3, (C2_OUT, C1_OUT, 3, 3), jnp.float32)
    b2 = 0.1 * jax.random.normal(k4, (C2_OUT,), jnp.float32)
    w3 = 0.1 * jax.random.normal(k5, (emb_dim, FLAT), jnp.float32)        # Linear (out,in)
    b3 = 0.1 * jax.random.normal(k6, (emb_dim,), jnp.float32)
    return dict(w1=w1, b1=b1, w2=w2, b2=b2, w3=w3, b3=b3)


def prepare_params(params):
    """Hoisted (call once): fold im2col into dense weight matrices, cast to bf16."""
    w1 = np.asarray(params["w1"], np.float32)   # (16,1,3,3)
    b1 = np.asarray(params["b1"], np.float32)
    w2 = np.asarray(params["w2"], np.float32)   # (48,16,3,3)
    b2 = np.asarray(params["b2"], np.float32)
    w3 = np.asarray(params["w3"], np.float32)   # (emb,192)
    b3 = np.asarray(params["b3"], np.float32)
    emb = w3.shape[0]
    out_lanes = max(128, _round_up(emb, 128))   # lane-dense output width

    # conv1 as dense (169 -> 576): row = y*13+x, col = s1*16 + c1
    W1 = np.zeros((IN_H * IN_W, H1_WIDTH), np.float32)
    for oy in range(OH1):
        for ox in range(OW1):
            s1 = oy * OW1 + ox
            for dy in range(3):
                for dx in range(3):
                    r = (2 * oy + dy) * IN_W + (2 * ox + dx)
                    W1[r, s1 * C1_OUT:(s1 + 1) * C1_OUT] = w1[:, 0, dy, dx]
    B1 = np.tile(b1, OH1 * OW1)                                   # (576,)

    # conv2 as dense (576 -> 192): row = s1*16 + c1, col = s2*48 + c2
    W2 = np.zeros((H1_WIDTH, FLAT), np.float32)
    for oy in range(OH2):
        for ox in range(OW2):
            s2 = oy * OW2 + ox
            for dy in range(3):
                for dx in range(3):
                    s1 = (2 * oy + dy) * OW1 + (2 * ox + dx)
                    W2[s1 * C1_OUT:(s1 + 1) * C1_OUT,
                       s2 * C2_OUT:(s2 + 1) * C2_OUT] = w2[:, :, dy, dx].T
    B2 = np.tile(b2, OH2 * OW2)                                   # (192,)

    # Linear: permute columns from PyTorch NCHW-flatten (c2*4 + oy*2 + ox) to the
    # kernel's h2 lane order (s2*48 + c2), then pad the output to 128 lanes.
    w3r = w3.reshape(emb, C2_OUT, OH2, OW2)                       # [e, c2, oy, ox]
    W3 = np.transpose(w3r, (2, 3, 1, 0)).reshape(FLAT, emb)       # [(oy,ox,c2), e]
    W3p = np.zeros((FLAT, out_lanes), np.float32)
    W3p[:, :emb] = W3
    B3p = np.zeros((out_lanes,), np.float32)
    B3p[:emb] = b3

    return dict(
        w1=jnp.asarray(W1).astype(jnp.bfloat16),
        b1=jnp.asarray(B1).reshape(1, -1),
        w2=jnp.asarray(W2).astype(jnp.bfloat16),
        b2=jnp.asarray(B2).reshape(1, -1),
        w3=jnp.asarray(W3p).astype(jnp.bfloat16),
        b3=jnp.asarray(B3p).reshape(1, -1),
    )


# ------------------------------ forward pass ------------------------------- #
def rnd_buffer_encoder_forward(x_nchw, prep, *, emb_dim):
    """Pallas implementation of RNDBufferEncoder.forward (== BaseEncoder(x))."""
    assert x_nchw.ndim == 4 and x_nchw.shape[1] == 1
    assert x_nchw.shape[2] == IN_H and x_nchw.shape[3] == IN_W
    N = x_nchw.shape[0]
    out_lanes = prep["w3"].shape[1]

    x_flat = x_nchw.reshape(N, IN_H * IN_W).astype(jnp.float32)   # (N, 169)

    TB = min(TB_MAX, _round_up(max(N, 1), 8))
    Npad = _round_up(N, TB)
    if Npad != N:
        x_flat = jnp.pad(x_flat, ((0, Npad - N), (0, 0)))
    grid = (Npad // TB,)

    flops = 2 * Npad * (IN_H * IN_W * H1_WIDTH + H1_WIDTH * FLAT + FLAT * out_lanes)
    bytes_accessed = (Npad * IN_H * IN_W * 4 + Npad * out_lanes * 4
                      + prep["w1"].size * 2 + prep["w2"].size * 2 + prep["w3"].size * 2
                      + (H1_WIDTH + FLAT + out_lanes) * 4)

    out_pad = pl.pallas_call(
        _fused_encoder_kernel,
        out_shape=jax.ShapeDtypeStruct((Npad, out_lanes), jnp.float32),
        grid=grid,
        in_specs=[
            pl.BlockSpec((TB, IN_H * IN_W), lambda i: (i, 0)),
            pl.BlockSpec((IN_H * IN_W, H1_WIDTH), lambda i: (0, 0)),
            pl.BlockSpec((1, H1_WIDTH), lambda i: (0, 0)),
            pl.BlockSpec((H1_WIDTH, FLAT), lambda i: (0, 0)),
            pl.BlockSpec((1, FLAT), lambda i: (0, 0)),
            pl.BlockSpec((FLAT, out_lanes), lambda i: (0, 0)),
            pl.BlockSpec((1, out_lanes), lambda i: (0, 0)),
        ],
        out_specs=pl.BlockSpec((TB, out_lanes), lambda i: (i, 0)),
        compiler_params=pltpu.CompilerParams(
            dimension_semantics=("parallel",),
            vmem_limit_bytes=32 * 1024 * 1024,
        ),
        cost_estimate=pl.CostEstimate(
            flops=flops, transcendentals=0, bytes_accessed=bytes_accessed),
    )(x_flat, prep["w1"], prep["b1"], prep["w2"], prep["b2"],
      prep["w3"], prep["b3"])

    return out_pad[:N, :emb_dim]


# ------------------------------ JAX reference ------------------------------ #
def reference_forward(x_nchw, params):
    """Pure-JAX reference (lax.conv) for correctness checking."""
    dn = ("NCHW", "OIHW", "NCHW")
    y = lax.conv_general_dilated(x_nchw, params["w1"], (2, 2), "VALID",
                                 dimension_numbers=dn)
    y = jnp.maximum(y + params["b1"][None, :, None, None], 0.0)
    y = lax.conv_general_dilated(y, params["w2"], (2, 2), "VALID",
                                 dimension_numbers=dn)
    y = jnp.maximum(y + params["b2"][None, :, None, None], 0.0)
    y = y.reshape(y.shape[0], -1)
    return y @ params["w3"].T + params["b3"]


# TODO(synk): train_encoder / _train_contrasive / get_diversity involve an Adam
# optimizer, autograd, RNG-gated loss terms and running-stat normalization;
# only the forward pass is implemented as a Pallas kernel here.

if __name__ == "__main__":
    emb_dim = 32
    N = 2                       # 13x13 single-channel input => out_size 192

    key = jax.random.PRNGKey(0)
    kx, kp = jax.random.split(key)
    x = jax.random.normal(kx, (N, 1, IN_H, IN_W), jnp.float32)
    params = init_params(kp, emb_dim)
    prep = prepare_params(params)   # hoisted one-time weight preprocessing

    fwd = jax.jit(rnd_buffer_encoder_forward, static_argnames=("emb_dim",))
    out = fwd(x, prep, emb_dim=emb_dim)
    out = jax.block_until_ready(out)

    ref = reference_forward(x, params)
    assert out.shape == (N, emb_dim)
    # bf16 MXU operands (f32 accumulation) -> loosened tolerance vs f32 reference.
    assert jnp.allclose(out, ref, atol=5e-2, rtol=5e-2), "mismatch vs reference"

    print("KERNEL_OK")
</pallas_src>

<mosaic_0001>
module attributes {stable_mosaic.version = 11 : i64} {
  func.func @_fused_encoder_kernel(%arg0: i32, %arg1: memref<8x169xf32, #tpu.memory_space<vmem>>, %arg2: memref<169x576xbf16, #tpu.memory_space<vmem>>, %arg3: memref<1x576xf32, #tpu.memory_space<vmem>>, %arg4: memref<576x192xbf16, #tpu.memory_space<vmem>>, %arg5: memref<1x192xf32, #tpu.memory_space<vmem>>, %arg6: memref<192x128xbf16, #tpu.memory_space<vmem>>, %arg7: memref<1x128xf32, #tpu.memory_space<vmem>>, %arg8: memref<8x128xf32, #tpu.memory_space<vmem>>) attributes {dimension_semantics = [#tpu.dimension_semantics<parallel>], iteration_bounds = array<i64: 1>, scalar_prefetch = 0 : i64, scratch_operands = 0 : i64, tpu.core_type = #tpu.core_type<tc>, window_params = [{transform_indices = @transform_0, window_bounds = array<i64: 8, 169>}, {pipeline_mode = #tpu.pipeline_mode<synchronous>, transform_indices = @transform_1, window_bounds = array<i64: 169, 576>}, {pipeline_mode = #tpu.pipeline_mode<synchronous>, transform_indices = @transform_2, window_bounds = array<i64: 1, 576>}, {pipeline_mode = #tpu.pipeline_mode<synchronous>, transform_indices = @transform_3, window_bounds = array<i64: 576, 192>}, {pipeline_mode = #tpu.pipeline_mode<synchronous>, transform_indices = @transform_4, window_bounds = array<i64: 1, 192>}, {pipeline_mode = #tpu.pipeline_mode<synchronous>, transform_indices = @transform_5, window_bounds = array<i64: 192, 128>}, {pipeline_mode = #tpu.pipeline_mode<synchronous>, transform_indices = @transform_6, window_bounds = array<i64: 1, 128>}, {transform_indices = @transform_7, window_bounds = array<i64: 8, 128>}]} {
    %c0 = arith.constant 0 : index
    %c0_0 = arith.constant 0 : index
    %0 = vector.load %arg1[%c0, %c0_0] : memref<8x169xf32, #tpu.memory_space<vmem>>, vector<8x169xf32>
    %1 = arith.truncf %0 : vector<8x169xf32> to vector<8x169xbf16>
    %c0_1 = arith.constant 0 : index
    %c0_2 = arith.constant 0 : index
    %2 = vector.load %arg2[%c0_1, %c0_2] : memref<169x576xbf16, #tpu.memory_space<vmem>>, vector<169x576xbf16>
    %cst = arith.constant dense<0.000000e+00> : vector<8x576xf32>
    %3 = tpu.matmul %1, %2, %cst {dimension_numbers = #tpu.dot_dimension_numbers<[1], [0], [0], [1], [0, 0, 1, 1], [], []>} : vector<8x169xbf16>, vector<169x576xbf16>, vector<8x576xf32> -> vector<8x576xf32>
    %c0_3 = arith.constant 0 : index
    %c0_4 = arith.constant 0 : index
    %4 = vector.load %arg3[%c0_3, %c0_4] : memref<1x576xf32, #tpu.memory_space<vmem>>, vector<1x576xf32>
    %5 = vector.broadcast %4 : vector<1x576xf32> to vector<8x576xf32>
    %6 = arith.addf %3, %5 : vector<8x576xf32>
    %cst_5 = arith.constant 0.000000e+00 : f32
    %7 = vector.broadcast %cst_5 : f32 to vector<8x576xf32>
    %8 = arith.maximumf %6, %7 : vector<8x576xf32>
    %9 = arith.truncf %8 : vector<8x576xf32> to vector<8x576xbf16>
    %c0_6 = arith.constant 0 : index
    %c0_7 = arith.constant 0 : index
    %10 = vector.load %arg4[%c0_6, %c0_7] : memref<576x192xbf16, #tpu.memory_space<vmem>>, vector<576x192xbf16>
    %cst_8 = arith.constant dense<0.000000e+00> : vector<8x192xf32>
    %11 = tpu.matmul %9, %10, %cst_8 {dimension_numbers = #tpu.dot_dimension_numbers<[1], [0], [0], [1], [0, 0, 1, 1], [], []>} : vector<8x576xbf16>, vector<576x192xbf16>, vector<8x192xf32> -> vector<8x192xf32>
    %c0_9 = arith.constant 0 : index
    %c0_10 = arith.constant 0 : index
    %12 = vector.load %arg5[%c0_9, %c0_10] : memref<1x192xf32, #tpu.memory_space<vmem>>, vector<1x192xf32>
    %13 = vector.broadcast %12 : vector<1x192xf32> to vector<8x192xf32>
    %14 = arith.addf %11, %13 : vector<8x192xf32>
    %cst_11 = arith.constant 0.000000e+00 : f32
    %15 = vector.broadcast %cst_11 : f32 to vector<8x192xf32>
    %16 = arith.maximumf %14, %15 : vector<8x192xf32>
    %17 = arith.truncf %16 : vector<8x192xf32> to vector<8x192xbf16>
    %c0_12 = arith.constant 0 : index
    %c0_13 = arith.constant 0 : index
    %18 = vector.load %arg6[%c0_12, %c0_13] : memref<192x128xbf16, #tpu.memory_space<vmem>>, vector<192x128xbf16>
    %cst_14 = arith.constant dense<0.000000e+00> : vector<8x128xf32>
    %19 = tpu.matmul %17, %18, %cst_14 {dimension_numbers = #tpu.dot_dimension_numbers<[1], [0], [0], [1], [0, 0, 1, 1], [], []>} : vector<8x192xbf16>, vector<192x128xbf16>, vector<8x128xf32> -> vector<8x128xf32>
    %c0_15 = arith.constant 0 : index
    %c0_16 = arith.constant 0 : index
    %20 = vector.load %arg7[%c0_15, %c0_16] : memref<1x128xf32, #tpu.memory_space<vmem>>, vector<1x128xf32>
    %21 = vector.broadcast %20 : vector<1x128xf32> to vector<8x128xf32>
    %22 = arith.addf %19, %21 : vector<8x128xf32>
    %c0_17 = arith.constant 0 : index
    %c0_18 = arith.constant 0 : index
    %23 = vector.load %arg8[%c0_17, %c0_18] : memref<8x128xf32, #tpu.memory_space<vmem>>, vector<8x128xf32>
    tpu.vector_store %arg8[%c0_17, %c0_18], %22 {strides = array<i32>} : memref<8x128xf32, #tpu.memory_space<vmem>>, vector<8x128xf32>,
    return
  }
  func.func @transform_0(%arg0: i32) -> (i32, i32) {
    %c0_i32 = arith.constant 0 : i32
    %c0_i32_0 = arith.constant 0 : i32
    return %arg0, %c0_i32 : i32, i32
  }
  func.func @transform_1(%arg0: i32) -> (i32, i32) {
    %c0_i32 = arith.constant 0 : i32
    %c0_i32_0 = arith.constant 0 : i32
    %c0_i32_1 = arith.constant 0 : i32
    return %c0_i32, %c0_i32_0 : i32, i32
  }
  func.func @transform_2(%arg0: i32) -> (i32, i32) {
    %c0_i32 = arith.constant 0 : i32
    %c0_i32_0 = arith.constant 0 : i32
    %c0_i32_1 = arith.constant 0 : i32
    return %c0_i32, %c0_i32_0 : i32, i32
  }
  func.func @transform_3(%arg0: i32) -> (i32, i32) {
    %c0_i32 = arith.constant 0 : i32
    %c0_i32_0 = arith.constant 0 : i32
    %c0_i32_1 = arith.constant 0 : i32
    return %c0_i32, %c0_i32_0 : i32, i32
  }
  func.func @transform_4(%arg0: i32) -> (i32, i32) {
    %c0_i32 = arith.constant 0 : i32
    %c0_i32_0 = arith.constant 0 : i32
    %c0_i32_1 = arith.constant 0 : i32
    return %c0_i32, %c0_i32_0 : i32, i32
  }
  func.func @transform_5(%arg0: i32) -> (i32, i32) {
    %c0_i32 = arith.constant 0 : i32
    %c0_i32_0 = arith.constant 0 : i32
    %c0_i32_1 = arith.constant 0 : i32
    return %c0_i32, %c0_i32_0 : i32, i32
  }
  func.func @transform_6(%arg0: i32) -> (i32, i32) {
    %c0_i32 = arith.constant 0 : i32
    %c0_i32_0 = arith.constant 0 : i32
    %c0_i32_1 = arith.constant 0 : i32
    return %c0_i32, %c0_i32_0 : i32, i32
  }
  func.func @transform_7(%arg0: i32) -> (i32, i32) {
    %c0_i32 = arith.constant 0 : i32
    %c0_i32_0 = arith.constant 0 : i32
    return %arg0, %c0_i32 : i32, i32
  }
}

</mosaic_0001>

<llo_original>
// kernel: rnd_buffer_encoder_forward.1
$region0: #{rnd_buffer_encoder_forward.1}
  #allocation0 [shape = 'u32[]', space=smem, size = 0x4, offset = 0x4, fixed_abs, tag = 'smem constant byte address 0x4 - core index']
  #allocation1 [shape = 'u32[144,128]{1,0:T(1,128)}', space=vmem, size = 0x12000, scoped, tag = 'internal scratch']
  %s0 = inlined_call_operand.vmem [shape: f32[8,169], index: 0, kind: input, shape index: {}]
  %s1 = inlined_call_operand.vmem [shape: bf16[169,576], index: 1, kind: input, shape index: {}]
  %s2 = inlined_call_operand.vmem [shape: f32[1,576], index: 2, kind: input, shape index: {}]
  %s3 = inlined_call_operand.vmem [shape: bf16[576,192], index: 3, kind: input, shape index: {}]
  %s4 = inlined_call_operand.vmem [shape: f32[1,192], index: 4, kind: input, shape index: {}]
  %s5 = inlined_call_operand.vmem [shape: bf16[192,128], index: 5, kind: input, shape index: {}]
  %s6 = inlined_call_operand.vmem [shape: f32[1,128], index: 6, kind: input, shape index: {}]
  %s7 = inlined_call_operand.vmem [shape: f32[8,128], index: 7, kind: output, shape index: {}]
  %s8 = sld [smem:[#allocation0]]
  $region38: #{rnd_buffer_encoder_forward.1} parent=0
    _
  %s10 = ssub.s32 1, %s8
  %s11 = scalar_select 0, %s10, %s8
  // Predicated region
  $region2: #{rnd_buffer_encoder_forward.1} parent=0 // pred_check
    _
  $region3: #{rnd_buffer_encoder_forward.1} parent=0 // pred_check_branch
    %13 = sbr.rel (0) target = $region5
  $region4: #{rnd_buffer_encoder_forward.1} parent=0 // pred_region
    _
  $region5: #{rnd_buffer_encoder_forward.1} parent=0 // pred_fallthru
    _
  // Predicated region
  $region6: #{rnd_buffer_encoder_forward.1} parent=0 // pred_check
    _
  $region7: #{rnd_buffer_encoder_forward.1} parent=0 // pred_check_branch
    %15 = sbr.rel (0) target = $region9
  $region8: #{rnd_buffer_encoder_forward.1} parent=0 // pred_region
    _
  $region9: #{rnd_buffer_encoder_forward.1} parent=0 // pred_fallthru
    _
  // Predicated region
  $region10: #{rnd_buffer_encoder_forward.1} parent=0 // pred_check
    _
  $region11: #{rnd_buffer_encoder_forward.1} parent=0 // pred_check_branch
    %17 = sbr.rel (0) target = $region13
  $region12: #{rnd_buffer_encoder_forward.1} parent=0 // pred_region
    _
  $region13: #{rnd_buffer_encoder_forward.1} parent=0 // pred_fallthru
    _
  // Predicated region
  $region14: #{rnd_buffer_encoder_forward.1} parent=0 // pred_check
    _
  $region15: #{rnd_buffer_encoder_forward.1} parent=0 // pred_check_branch
    %19 = sbr.rel (0) target = $region17
  $region16: #{rnd_buffer_encoder_forward.1} parent=0 // pred_region
    _
  $region17: #{rnd_buffer_encoder_forward.1} parent=0 // pred_fallthru
    _
  // Predicated region
  $region18: #{rnd_buffer_encoder_forward.1} parent=0 // pred_check
    _
  $region19: #{rnd_buffer_encoder_forward.1} parent=0 // pred_check_branch
    %21 = sbr.rel (0) target = $region21
  $region20: #{rnd_buffer_encoder_forward.1} parent=0 // pred_region
    _
  $region21: #{rnd_buffer_encoder_forward.1} parent=0 // pred_fallthru
    _
  // Predicated region
  $region22: #{rnd_buffer_encoder_forward.1} parent=0 // pred_check
    _
  $region23: #{rnd_buffer_encoder_forward.1} parent=0 // pred_check_branch
    %23 = sbr.rel (0) target = $region25
  $region24: #{rnd_buffer_encoder_forward.1} parent=0 // pred_region
    _
  $region25: #{rnd_buffer_encoder_forward.1} parent=0 // pred_fallthru
    _
  // Predicated region
  $region26: #{rnd_buffer_encoder_forward.1} parent=0 // pred_check
    _
  $region27: #{rnd_buffer_encoder_forward.1} parent=0 // pred_check_branch
    %25 = sbr.rel (0) target = $region29
  $region28: #{rnd_buffer_encoder_forward.1} parent=0 // pred_region
    _
  $region29: #{rnd_buffer_encoder_forward.1} parent=0 // pred_fallthru
    _
  %v27 = vld [vmem:[%s0] sm:$0xff]
  %v28 = vld [vmem:[%s0 + $0x8] sm:$0xff]
  %v29 = vpack.c.bf16 %v27, %v27
  %v30 = vpack.c.bf16 %v28, %v28
  %v31 = vld [vmem:[%s1] sm:$0xff]
  %v32 = vld [vmem:[%s1 + $0x8] sm:$0xff]
  %v33 = vld [vmem:[%s1 + $0x10] sm:$0xf]
  %v34 = vld [vmem:[%s1 + $0x14] sm:$0xff]
  %v35 = vld [vmem:[%s1 + $0x1c] sm:$0xff]
  %v36 = vld [vmem:[%s1 + $0x24] sm:$0xf]
  %v37 = vld [vmem:[%s1 + $0x28] sm:$0xff]
  %v38 = vld [vmem:[%s1 + $0x30] sm:$0xff]
  %v39 = vld [vmem:[%s1 + $0x38] sm:$0xf]
  %v40 = vld [vmem:[%s1 + $0x3c] sm:$0xff]
  %v41 = vld [vmem:[%s1 + $0x44] sm:$0xff]
  %v42 = vld [vmem:[%s1 + $0x4c] sm:$0xf]
  %v43 = vld [vmem:[%s1 + $0x50] sm:$0xff]
  %v44 = vld [vmem:[%s1 + $0x58] sm:$0xff]
  %v45 = vld [vmem:[%s1 + $0x60] sm:$0xf]
  %v46 = vld [vmem:[%s1 + $0x64] sm:$0xff]
  %v47 = vld [vmem:[%s1 + $0x6c] sm:$0xff]
  %v48 = vld [vmem:[%s1 + $0x74] sm:$0xf]
  %v49 = vld [vmem:[%s1 + $0x78] sm:$0xff]
  %v50 = vld [vmem:[%s1 + $0x80] sm:$0xff]
  %v51 = vld [vmem:[%s1 + $0x88] sm:$0xf]
  %v52 = vld [vmem:[%s1 + $0x8c] sm:$0xff]
  %v53 = vld [vmem:[%s1 + $0x94] sm:$0xff]
  %v54 = vld [vmem:[%s1 + $0x9c] sm:$0xf]
  %v55 = vld [vmem:[%s1 + $0xa0] sm:$0xff]
  %v56 = vld [vmem:[%s1 + $0xa8] sm:$0xff]
  %v57 = vld [vmem:[%s1 + $0xb0] sm:$0xf]
  %v58 = vld [vmem:[%s1 + $0xb4] sm:$0xff]
  %v59 = vld [vmem:[%s1 + $0xbc] sm:$0xff]
  %v60 = vld [vmem:[%s1 + $0xc4] sm:$0xf]
  %v61 = vld [vmem:[%s1 + $0xc8] sm:$0xff]
  %v62 = vld [vmem:[%s1 + $0xd0] sm:$0xff]
  %v63 = vld [vmem:[%s1 + $0xd8] sm:$0xf]
  %v64 = vld [vmem:[%s1 + $0xdc] sm:$0xff]
  %v65 = vld [vmem:[%s1 + $0xe4] sm:$0xff]
  %v66 = vld [vmem:[%s1 + $0xec] sm:$0xf]
  %v67 = vld [vmem:[%s1 + $0xf0] sm:$0xff]
  %v68 = vld [vmem:[%s1 + $0xf8] sm:$0xff]
  %v69 = vld [vmem:[%s1 + $0x100] sm:$0xf]
  %v70 = vld [vmem:[%s1 + $0x104] sm:$0xff]
  %v71 = vld [vmem:[%s1 + $0x10c] sm:$0xff]
  %v72 = vld [vmem:[%s1 + $0x114] sm:$0xf]
  %v73 = vld [vmem:[%s1 + $0x118] sm:$0xff]
  %v74 = vld [vmem:[%s1 + $0x120] sm:$0xff]
  %v75 = vld [vmem:[%s1 + $0x128] sm:$0xf]
  %v76 = vld [vmem:[%s1 + $0x12c] sm:$0xff]
  %v77 = vld [vmem:[%s1 + $0x134] sm:$0xff]
  %v78 = vld [vmem:[%s1 + $0x13c] sm:$0xf]
  %v79 = vld [vmem:[%s1 + $0x140] sm:$0xff]
  %v80 = vld [vmem:[%s1 + $0x148] sm:$0xff]
  %v81 = vld [vmem:[%s1 + $0x150] sm:$0xf]
  %v82 = vld [vmem:[%s1 + $0x154] sm:$0xff]
  %v83 = vld [vmem:[%s1 + $0x15c] sm:$0xff]
  %v84 = vld [vmem:[%s1 + $0x164] sm:$0xf]
  %v85 = vld [vmem:[%s1 + $0x168] sm:$0xff]
  %v86 = vld [vmem:[%s1 + $0x170] sm:$0xff]
  %v87 = vld [vmem:[%s1 + $0x178] sm:$0xf]
  %v88 = vld [vmem:[%s1 + $0x17c] sm:$0xff]
  %v89 = vld [vmem:[%s1 + $0x184] sm:$0xff]
  %v90 = vld [vmem:[%s1 + $0x18c] sm:$0xf]
  %v91 = vld [vmem:[%s1 + $0x190] sm:$0xff]
  %v92 = vld [vmem:[%s1 + $0x198] sm:$0xff]
  %v93 = vld [vmem:[%s1 + $0x1a0] sm:$0xf]
  %v94 = vld [vmem:[%s1 + $0x1a4] sm:$0x11]
  %v95 = vld [vmem:[%s1 + $0x1ac] sm:$0x11]
  %v96 = vld [vmem:[%s1 + $0x1b4] sm:$0x1]
  %v97 = vld [vmem:[%s2] sm:$0x1f]
  %v99 = vlaneseq
  %v100 = vshrl.u32 %v99, 7
  %v101 = vsub.s32 0, %v100
  %v102 = vrot.slane %v97, %v101
  %v103 = vlaneseq
  %v104 = vshrl.u32 %v103, 7
  %v105 = vsub.s32 1, %v104
  %v106 = vrot.slane %v97, %v105
  %v107 = vlaneseq
  %v108 = vshrl.u32 %v107, 7
  %v109 = vsub.s32 2, %v108
  %v110 = vrot.slane %v97, %v109
  %v111 = vlaneseq
  %v112 = vshrl.u32 %v111, 7
  %v113 = vsub.s32 3, %v112
  %v114 = vrot.slane %v97, %v113
  %v115 = vlaneseq
  %v116 = vshrl.u32 %v115, 7
  %v117 = vsub.s32 4, %v116
  %v118 = vrot.slane %v97, %v117
  %v190 = vunpack.c.l.b16 %v31
  %v191 = vunpack.c.h.b16 %v31
  %v192 = vunpack.c.l.b16 %v32
  %v193 = vunpack.c.h.b16 %v32
  %v194 = vunpack.c.l.b16 %v33
  %v195 = vunpack.c.l.b16 %v34
  %v196 = vunpack.c.h.b16 %v34
  %v197 = vunpack.c.l.b16 %v35
  %v198 = vunpack.c.h.b16 %v35
  %v199 = vunpack.c.l.b16 %v36
  %v200 = vunpack.c.l.b16 %v37
  %v201 = vunpack.c.h.b16 %v37
  %v202 = vunpack.c.l.b16 %v38
  %v203 = vunpack.c.h.b16 %v38
  %v204 = vunpack.c.l.b16 %v39
  %v205 = vunpack.c.l.b16 %v40
  %v206 = vunpack.c.h.b16 %v40
  %v207 = vunpack.c.l.b16 %v41
  %v208 = vunpack.c.h.b16 %v41
  %v209 = vunpack.c.l.b16 %v42
  %v210 = vunpack.c.l.b16 %v43
  %v211 = vunpack.c.h.b16 %v43
  %v212 = vunpack.c.l.b16 %v44
  %v213 = vunpack.c.h.b16 %v44
  %v214 = vunpack.c.l.b16 %v45
  %v215 = vunpack.c.l.b16 %v46
  %v216 = vunpack.c.h.b16 %v46
  %v217 = vunpack.c.l.b16 %v47
  %v218 = vunpack.c.h.b16 %v47
  %v219 = vunpack.c.l.b16 %v48
  %v220 = vunpack.c.l.b16 %v49
  %v221 = vunpack.c.h.b16 %v49
  %v222 = vunpack.c.l.b16 %v50
  %v223 = vunpack.c.h.b16 %v50
  %v224 = vunpack.c.l.b16 %v51
  %v225 = vunpack.c.l.b16 %v52
  %v226 = vunpack.c.h.b16 %v52
  %v227 = vunpack.c.l.b16 %v53
  %v228 = vunpack.c.h.b16 %v53
  %v229 = vunpack.c.l.b16 %v54
  %v230 = vunpack.c.l.b16 %v55
  %v231 = vunpack.c.h.b16 %v55
  %v232 = vunpack.c.l.b16 %v56
  %v233 = vunpack.c.h.b16 %v56
  %v234 = vunpack.c.l.b16 %v57
  %v235 = vunpack.c.l.b16 %v58
  %v236 = vunpack.c.h.b16 %v58
  %v237 = vunpack.c.l.b16 %v59
  %v238 = vunpack.c.h.b16 %v59
  %v239 = vunpack.c.l.b16 %v60
  %v240 = vunpack.c.l.b16 %v61
  %v241 = vunpack.c.h.b16 %v61
  %v242 = vunpack.c.l.b16 %v62
  %v243 = vunpack.c.h.b16 %v62
  %v244 = vunpack.c.l.b16 %v63
  %v245 = vunpack.c.l.b16 %v64
  %v246 = vunpack.c.h.b16 %v64
  %v247 = vunpack.c.l.b16 %v65
  %v248 = vunpack.c.h.b16 %v65
  %v249 = vunpack.c.l.b16 %v66
  %v250 = vunpack.c.l.b16 %v67
  %v251 = vunpack.c.h.b16 %v67
  %v252 = vunpack.c.l.b16 %v68
  %v253 = vunpack.c.h.b16 %v68
  %v254 = vunpack.c.l.b16 %v69
  %v255 = vunpack.c.l.b16 %v70
  %v256 = vunpack.c.h.b16 %v70
  %v257 = vunpack.c.l.b16 %v71
  %v258 = vunpack.c.h.b16 %v71
  %v259 = vunpack.c.l.b16 %v72
  %v260 = vunpack.c.l.b16 %v73
  %v261 = vunpack.c.h.b16 %v73
  %v262 = vunpack.c.l.b16 %v74
  %v263 = vunpack.c.h.b16 %v74
  %v264 = vunpack.c.l.b16 %v75
  %v265 = vunpack.c.l.b16 %v76
  %v266 = vunpack.c.h.b16 %v76
  %v267 = vunpack.c.l.b16 %v77
  %v268 = vunpack.c.h.b16 %v77
  %v269 = vunpack.c.l.b16 %v78
  %v270 = vunpack.c.l.b16 %v79
  %v271 = vunpack.c.h.b16 %v79
  %v272 = vunpack.c.l.b16 %v80
  %v273 = vunpack.c.h.b16 %v80
  %v274 = vunpack.c.l.b16 %v81
  %v275 = vunpack.c.l.b16 %v82
  %v276 = vunpack.c.h.b16 %v82
  %v277 = vunpack.c.l.b16 %v83
  %v278 = vunpack.c.h.b16 %v83
  %v279 = vunpack.c.l.b16 %v84
  %v280 = vunpack.c.l.b16 %v85
  %v281 = vunpack.c.h.b16 %v85
  %v282 = vunpack.c.l.b16 %v86
  %v283 = vunpack.c.h.b16 %v86
  %v284 = vunpack.c.l.b16 %v87
  %v285 = vunpack.c.l.b16 %v88
  %v286 = vunpack.c.h.b16 %v88
  %v287 = vunpack.c.l.b16 %v89
  %v288 = vunpack.c.h.b16 %v89
  %v289 = vunpack.c.l.b16 %v90
  %v290 = vunpack.c.l.b16 %v91
  %v291 = vunpack.c.h.b16 %v91
  %v292 = vunpack.c.l.b16 %v92
  %v293 = vunpack.c.h.b16 %v92
  %v294 = vunpack.c.l.b16 %v93
  %v295 = vunpack.c.l.b16 %v94
  %v296 = vunpack.c.h.b16 %v94
  %v297 = vunpack.c.l.b16 %v95
  %v298 = vunpack.c.h.b16 %v95
  %v299 = vunpack.c.l.b16 %v96
  %v300 = vpack.c.b16 %v195, %v190
  %v301 = vpack.c.b16 %v196, %v191
  %v302 = vpack.c.b16 %v197, %v192
  %v303 = vpack.c.b16 %v198, %v193
  %v304 = vpack.c.b16 %v199, %v194
  %v305 = vpack.c.b16 %v205, %v200
  %v306 = vpack.c.b16 %v206, %v201
  %v307 = vpack.c.b16 %v207, %v202
  %v308 = vpack.c.b16 %v208, %v203
  %v309 = vpack.c.b16 %v209, %v204
  %v310 = vpack.c.b16 %v215, %v210
  %v311 = vpack.c.b16 %v216, %v211
  %v312 = vpack.c.b16 %v217, %v212
  %v313 = vpack.c.b16 %v218, %v213
  %v314 = vpack.c.b16 %v219, %v214
  %v315 = vpack.c.b16 %v225, %v220
  %v316 = vpack.c.b16 %v226, %v221
  %v317 = vpack.c.b16 %v227, %v222
  %v318 = vpack.c.b16 %v228, %v223
  %v319 = vpack.c.b16 %v229, %v224
  %v320 = vpack.c.b16 %v235, %v230
  %v321 = vpack.c.b16 %v236, %v231
  %v322 = vpack.c.b16 %v237, %v232
  %v323 = vpack.c.b16 %v238, %v233
  %v324 = vpack.c.b16 %v239, %v234
  %v325 = vpack.c.b16 %v245, %v240
  %v326 = vpack.c.b16 %v246, %v241
  %v327 = vpack.c.b16 %v247, %v242
  %v328 = vpack.c.b16 %v248, %v243
  %v329 = vpack.c.b16 %v249, %v244
  %v330 = vpack.c.b16 %v255, %v250
  %v331 = vpack.c.b16 %v256, %v251
  %v332 = vpack.c.b16 %v257, %v252
  %v333 = vpack.c.b16 %v258, %v253
  %v334 = vpack.c.b16 %v259, %v254
  %v335 = vpack.c.b16 %v265, %v260
  %v336 = vpack.c.b16 %v266, %v261
  %v337 = vpack.c.b16 %v267, %v262
  %v338 = vpack.c.b16 %v268, %v263
  %v339 = vpack.c.b16 %v269, %v264
  %v340 = vpack.c.b16 %v275, %v270
  %v341 = vpack.c.b16 %v276, %v271
  %v342 = vpack.c.b16 %v277, %v272
  %v343 = vpack.c.b16 %v278, %v273
  %v344 = vpack.c.b16 %v279, %v274
  %v345 = vpack.c.b16 %v285, %v280
  %v346 = vpack.c.b16 %v286, %v281
  %v347 = vpack.c.b16 %v287, %v282
  %v348 = vpack.c.b16 %v288, %v283
  %v349 = vpack.c.b16 %v289, %v284
  %v350 = vpack.c.b16 %v295, %v290
  %v351 = vpack.c.b16 %v296, %v291
  %v352 = vpack.c.b16 %v297, %v292
  %v353 = vpack.c.b16 %v298, %v293
  %v354 = vpack.c.b16 %v299, %v294
  %vm405 = vcmask 334848
  %v407 = vsel %vm405, %v30, 0
  %vm409 = vcmask 1043456
  %vm410 = vcmask 1044480
  %v411 = vsel %vm409, 4294967295, 65535
  %v412 = vsel %vm410, %v411, 0
  %v414 = vand.u32 %v350, %v412
  %v417 = vand.u32 %v351, %v412
  %v420 = vand.u32 %v352, %v412
  %v423 = vand.u32 %v353, %v412
  %v426 = vand.u32 %v354, %v412
  %428 = vmatprep.subr.bf16.mxu0 %v336
  %429 = vmatpush1.bf16.msra.mxu0 %v335
  %430 = vmatprep.subr.bf16.mxu0 %v331
  %431 = vmatpush1.bf16.msra.mxu0 %v330
  %432 = vmatprep.subr.bf16.mxu0 %v326
  %433 = vmatpush1.bf16.msra.mxu0 %v325
  %434 = vmatprep.subr.bf16.mxu0 %v321
  %435 = vmatpush1.bf16.msra.mxu0 %v320
  %436 = vmatprep.subr.bf16.mxu0 %v316
  %437 = vmatpush1.bf16.msra.mxu0 %v315
  %438 = vmatprep.subr.bf16.mxu0 %v311
  %439 = vmatpush1.bf16.msra.mxu0 %v310
  %440 = vmatprep.subr.bf16.mxu0 %v306
  %441 = vmatpush1.bf16.msra.mxu0 %v305
  %442 = vmatprep.subr.bf16.mxu0 %v301
  %443 = vmatpush1.bf16.msra.mxu0 %v300
  %444 = vmatprep.subr.bf16.mxu0 0
  %445 = vmatpush2.bf16.msra.mxu0 0
  %446 = vmatprep.subr.bf16.mxu0 0
  %447 = vmatpush2.bf16.msra.mxu0 0
  %448 = vmatprep.subr.bf16.mxu0 0
  %449 = vmatpush2.bf16.msra.mxu0 0
  %450 = vmatprep.subr.bf16.mxu0 0
  %451 = vmatpush2.bf16.msra.mxu0 0
  %452 = vmatprep.subr.bf16.mxu0 0
  %453 = vmatpush2.bf16.msra.mxu0 0
  %454 = vmatprep.subr.bf16.mxu0 %v417
  %455 = vmatpush2.bf16.msra.mxu0 %v414
  %456 = vmatprep.subr.bf16.mxu0 %v346
  %457 = vmatpush2.bf16.msra.mxu0 %v345
  %458 = vmatprep.subr.bf16.mxu0 %v341
  %459 = vmatpush2.bf16.msra.mxu0 %v340
  %460 = vmatprep.mubr.bf16.mxu0 %v407
  %461 = vmatmul.mubr.bf16.gmra.mxu0 %v29
  %v462 = vpop.f32.mrf.mxu0
  %v463 = vadd.f32 %v102, %v462
  %v464 = vpop.f32.mrf.mxu0
  %v465 = vadd.f32 %v106, %v464
  %v466 = vpop.f32.mrf.mxu0
  %v467 = vpop.f32.mrf.mxu0
  %468 = vdwg.mxu0
  %469 = vmatprep.subr.bf16.mxu0 %v338
  %470 = vmatpush1.bf16.msra.mxu0 %v337
  %471 = vmatprep.subr.bf16.mxu0 %v333
  %472 = vmatpush1.bf16.msra.mxu0 %v332
  %473 = vmatprep.subr.bf16.mxu0 %v328
  %474 = vmatpush1.bf16.msra.mxu0 %v327
  %475 = vmatprep.subr.bf16.mxu0 %v323
  %476 = vmatpush1.bf16.msra.mxu0 %v322
  %477 = vmatprep.subr.bf16.mxu0 %v318
  %478 = vmatpush1.bf16.msra.mxu0 %v317
  %479 = vmatprep.subr.bf16.mxu0 %v313
  %480 = vmatpush1.bf16.msra.mxu0 %v312
  %481 = vmatprep.subr.bf16.mxu0 %v308
  %482 = vmatpush1.bf16.msra.mxu0 %v307
  %483 = vmatprep.subr.bf16.mxu0 %v303
  %484 = vmatpush1.bf16.msra.mxu0 %v302
  %485 = vmatprep.subr.bf16.mxu0 0
  %486 = vmatpush2.bf16.msra.mxu0 0
  %487 = vmatprep.subr.bf16.mxu0 0
  %488 = vmatpush2.bf16.msra.mxu0 0
  %489 = vmatprep.subr.bf16.mxu0 0
  %490 = vmatpush2.bf16.msra.mxu0 0
  %491 = vmatprep.subr.bf16.mxu0 0
  %492 = vmatpush2.bf16.msra.mxu0 0
  %493 = vmatprep.subr.bf16.mxu0 0
  %494 = vmatpush2.bf16.msra.mxu0 0
  %495 = vmatprep.subr.bf16.mxu0 %v423
  %496 = vmatpush2.bf16.msra.mxu0 %v420
  %497 = vmatprep.subr.bf16.mxu0 %v348
  %498 = vmatpush2.bf16.msra.mxu0 %v347
  %499 = vmatprep.subr.bf16.mxu0 %v343
  %500 = vmatpush2.bf16.msra.mxu0 %v342
  %501 = vmatprep.mubr.bf16.mxu0 %v407
  %502 = vmatmul.mubr.bf16.gmra.mxu0 %v29
  %v503 = vpop.f32.mrf.mxu0
  %v504 = vadd.f32 %v110, %v503
  %v505 = vpop.f32.mrf.mxu0
  %v506 = vadd.f32 %v114, %v505
  %v507 = vpop.f32.mrf.mxu0
  %v508 = vpop.f32.mrf.mxu0
  %509 = vdwg.mxu0
  %510 = vmatprep.subr.bf16.mxu0 0
  %511 = vmatpush1.bf16.msra.mxu0 %v339
  %512 = vmatprep.subr.bf16.mxu0 0
  %513 = vmatpush1.bf16.msra.mxu0 %v334
  %514 = vmatprep.subr.bf16.mxu0 0
  %515 = vmatpush1.bf16.msra.mxu0 %v329
  %516 = vmatprep.subr.bf16.mxu0 0
  %517 = vmatpush1.bf16.msra.mxu0 %v324
  %518 = vmatprep.subr.bf16.mxu0 0
  %519 = vmatpush1.bf16.msra.mxu0 %v319
  %520 = vmatprep.subr.bf16.mxu0 0
  %521 = vmatpush1.bf16.msra.mxu0 %v314
  %522 = vmatprep.subr.bf16.mxu0 0
  %523 = vmatpush1.bf16.msra.mxu0 %v309
  %524 = vmatprep.subr.bf16.mxu0 0
  %525 = vmatpush1.bf16.msra.mxu0 %v304
  %526 = vmatprep.subr.bf16.mxu0 0
  %527 = vmatpush2.bf16.msra.mxu0 0
  %528 = vmatprep.subr.bf16.mxu0 0
  %529 = vmatpush2.bf16.msra.mxu0 0
  %530 = vmatprep.subr.bf16.mxu0 0
  %531 = vmatpush2.bf16.msra.mxu0 0
  %532 = vmatprep.subr.bf16.mxu0 0
  %533 = vmatpush2.bf16.msra.mxu0 0
  %534 = vmatprep.subr.bf16.mxu0 0
  %535 = vmatpush2.bf16.msra.mxu0 0
  %536 = vmatprep.subr.bf16.mxu0 0
  %537 = vmatpush2.bf16.msra.mxu0 %v426
  %538 = vmatprep.subr.bf16.mxu0 0
  %539 = vmatpush2.bf16.msra.mxu0 %v349
  %540 = vmatprep.subr.bf16.mxu0 0
  %541 = vmatpush2.bf16.msra.mxu0 %v344
  %542 = vmatprep.mubr.bf16.mxu0 %v407
  %543 = vmatmul.mubr.bf16.gmra.mxu0 %v29
  %v544 = vpop.f32.mrf.mxu0
  %v545 = vadd.f32 %v118, %v544
  %v546 = vpop.f32.mrf.mxu0
  %v547 = vpop.f32.mrf.mxu0
  %v548 = vpop.f32.mrf.mxu0
  %549 = vdwg.mxu0
  %v550 = vmax.f32 %v463, 0.0
  %v551 = vmax.f32 %v465, 0.0
  %v552 = vmax.f32 %v504, 0.0
  %v553 = vmax.f32 %v506, 0.0
  %v554 = vmax.f32 %v545, 0.0
  %v555 = vpack.c.bf16 %v550, %v550
  %v556 = vpack.c.bf16 %v551, %v551
  %v557 = vpack.c.bf16 %v552, %v552
  %v558 = vpack.c.bf16 %v553, %v553
  %v559 = vpack.c.bf16 %v554, %v554
  %v560 = vld [vmem:[%s3] sm:$0xff]
  %v561 = vld [vmem:[%s3 + $0x8] sm:$0xff]
  %v562 = vld [vmem:[%s3 + $0x10] sm:$0xff]
  %v563 = vld [vmem:[%s3 + $0x18] sm:$0xff]
  %v564 = vld [vmem:[%s3 + $0x20] sm:$0xff]
  %v565 = vld [vmem:[%s3 + $0x28] sm:$0xff]
  %v566 = vld [vmem:[%s3 + $0x30] sm:$0xff]
  %v567 = vld [vmem:[%s3 + $0x38] sm:$0xff]
  %v568 = vld [vmem:[%s3 + $0x40] sm:$0xff]
  %v569 = vld [vmem:[%s3 + $0x48] sm:$0xff]
  %v570 = vld [vmem:[%s3 + $0x50] sm:$0xff]
  %v571 = vld [vmem:[%s3 + $0x58] sm:$0xff]
  %v572 = vld [vmem:[%s3 + $0x60] sm:$0xff]
  %v573 = vld [vmem:[%s3 + $0x68] sm:$0xff]
  %v574 = vld [vmem:[%s3 + $0x70] sm:$0xff]
  %v575 = vld [vmem:[%s3 + $0x78] sm:$0xff]
  %v576 = vld [vmem:[%s3 + $0x80] sm:$0xff]
  %v577 = vld [vmem:[%s3 + $0x88] sm:$0xff]
  %v578 = vld [vmem:[%s3 + $0x90] sm:$0xff]
  %v579 = vld [vmem:[%s3 + $0x98] sm:$0xff]
  %v580 = vld [vmem:[%s3 + $0xa0] sm:$0xff]
  %v581 = vld [vmem:[%s3 + $0xa8] sm:$0xff]
  %v582 = vld [vmem:[%s3 + $0xb0] sm:$0xff]
  %v583 = vld [vmem:[%s3 + $0xb8] sm:$0xff]
  %v584 = vld [vmem:[%s3 + $0xc0] sm:$0xff]
  %v585 = vld [vmem:[%s3 + $0xc8] sm:$0xff]
  %v586 = vld [vmem:[%s3 + $0xd0] sm:$0xff]
  %v587 = vld [vmem:[%s3 + $0xd8] sm:$0xff]
  %v588 = vld [vmem:[%s3 + $0xe0] sm:$0xff]
  %v589 = vld [vmem:[%s3 + $0xe8] sm:$0xff]
  %v590 = vld [vmem:[%s3 + $0xf0] sm:$0xff]
  %v591 = vld [vmem:[%s3 + $0xf8] sm:$0xff]
  %v592 = vld [vmem:[%s3 + $0x100] sm:$0xff]
  %v593 = vld [vmem:[%s3 + $0x108] sm:$0xff]
  %v594 = vld [vmem:[%s3 + $0x110] sm:$0xff]
  %v595 = vld [vmem:[%s3 + $0x118] sm:$0xff]
  %v596 = vld [vmem:[%s3 + $0x120] sm:$0xff]
  %v597 = vld [vmem:[%s3 + $0x128] sm:$0xff]
  %v598 = vld [vmem:[%s3 + $0x130] sm:$0xff]
  %v599 = vld [vmem:[%s3 + $0x138] sm:$0xff]
  %v600 = vld [vmem:[%s3 + $0x140] sm:$0xff]
  %v601 = vld [vmem:[%s3 + $0x148] sm:$0xff]
  %v602 = vld [vmem:[%s3 + $0x150] sm:$0xff]
  %v603 = vld [vmem:[%s3 + $0x158] sm:$0xff]
  %v604 = vld [vmem:[%s3 + $0x160] sm:$0xff]
  %v605 = vld [vmem:[%s3 + $0x168] sm:$0xff]
  %v606 = vld [vmem:[%s3 + $0x170] sm:$0xff]
  %v607 = vld [vmem:[%s3 + $0x178] sm:$0xff]
  %v608 = vld [vmem:[%s3 + $0x180] sm:$0xff]
  %v609 = vld [vmem:[%s3 + $0x188] sm:$0xff]
  %v610 = vld [vmem:[%s3 + $0x190] sm:$0xff]
  %v611 = vld [vmem:[%s3 + $0x198] sm:$0xff]
  %v612 = vld [vmem:[%s3 + $0x1a0] sm:$0xff]
  %v613 = vld [vmem:[%s3 + $0x1a8] sm:$0xff]
  %v614 = vld [vmem:[%s3 + $0x1b0] sm:$0xff]
  %v615 = vld [vmem:[%s3 + $0x1b8] sm:$0xff]
  %v616 = vld [vmem:[%s3 + $0x1c0] sm:$0xff]
  %v617 = vld [vmem:[%s3 + $0x1c8] sm:$0xff]
  %v618 = vld [vmem:[%s3 + $0x1d0] sm:$0xff]
  %v619 = vld [vmem:[%s3 + $0x1d8] sm:$0xff]
  %v620 = vld [vmem:[%s3 + $0x1e0] sm:$0xff]
  %v621 = vld [vmem:[%s3 + $0x1e8] sm:$0xff]
  %v622 = vld [vmem:[%s3 + $0x1f0] sm:$0xff]
  %v623 = vld [vmem:[%s3 + $0x1f8] sm:$0xff]
  %v624 = vld [vmem:[%s3 + $0x200] sm:$0xff]
  %v625 = vld [vmem:[%s3 + $0x208] sm:$0xff]
  %v626 = vld [vmem:[%s3 + $0x210] sm:$0xff]
  %v627 = vld [vmem:[%s3 + $0x218] sm:$0xff]
  %v628 = vld [vmem:[%s3 + $0x220] sm:$0xff]
  %v629 = vld [vmem:[%s3 + $0x228] sm:$0xff]
  %v630 = vld [vmem:[%s3 + $0x230] sm:$0xff]
  %v631 = vld [vmem:[%s3 + $0x238] sm:$0xff]
  %v632 = vld [vmem:[%s4] sm:$0x3]
  %v634 = vlaneseq
  %v635 = vshrl.u32 %v634, 7
  %v636 = vsub.s32 0, %v635
  %v637 = vrot.slane %v632, %v636
  %v638 = vlaneseq
  %v639 = vshrl.u32 %v638, 7
  %v640 = vsub.s32 1, %v639
  %v641 = vrot.slane %v632, %v640
  %v716 = vunpack.c.l.b16 %v560
  %v717 = vunpack.c.h.b16 %v560
  %v718 = vunpack.c.l.b16 %v561
  %v719 = vunpack.c.h.b16 %v561
  %v720 = vunpack.c.l.b16 %v562
  %v721 = vunpack.c.h.b16 %v562
  %v722 = vunpack.c.l.b16 %v563
  %v723 = vunpack.c.h.b16 %v563
  %v724 = vunpack.c.l.b16 %v564
  %v725 = vunpack.c.h.b16 %v564
  %v726 = vunpack.c.l.b16 %v565
  %v727 = vunpack.c.h.b16 %v565
  %v728 = vunpack.c.l.b16 %v566
  %v729 = vunpack.c.h.b16 %v566
  %v730 = vunpack.c.l.b16 %v567
  %v731 = vunpack.c.h.b16 %v567
  %v732 = vunpack.c.l.b16 %v568
  %v733 = vunpack.c.h.b16 %v568
  %v734 = vunpack.c.l.b16 %v569
  %v735 = vunpack.c.h.b16 %v569
  %v736 = vunpack.c.l.b16 %v570
  %v737 = vunpack.c.h.b16 %v570
  %v738 = vunpack.c.l.b16 %v571
  %v739 = vunpack.c.h.b16 %v571
  %v740 = vunpack.c.l.b16 %v572
  %v741 = vunpack.c.h.b16 %v572
  %v742 = vunpack.c.l.b16 %v573
  %v743 = vunpack.c.h.b16 %v573
  %v744 = vunpack.c.l.b16 %v574
  %v745 = vunpack.c.h.b16 %v574
  %v746 = vunpack.c.l.b16 %v575
  %v747 = vunpack.c.h.b16 %v575
  %v748 = vunpack.c.l.b16 %v576
  %v749 = vunpack.c.h.b16 %v576
  %v750 = vunpack.c.l.b16 %v577
  %v751 = vunpack.c.h.b16 %v577
  %v752 = vunpack.c.l.b16 %v578
  %v753 = vunpack.c.h.b16 %v578
  %v754 = vunpack.c.l.b16 %v579
  %v755 = vunpack.c.h.b16 %v579
  %v756 = vunpack.c.l.b16 %v580
  %v757 = vunpack.c.h.b16 %v580
  %v758 = vunpack.c.l.b16 %v581
  %v759 = vunpack.c.h.b16 %v581
  %v760 = vunpack.c.l.b16 %v582
  %v761 = vunpack.c.h.b16 %v582
  %v762 = vunpack.c.l.b16 %v583
  %v763 = vunpack.c.h.b16 %v583
  %v764 = vunpack.c.l.b16 %v584
  %v765 = vunpack.c.h.b16 %v584
  %v766 = vunpack.c.l.b16 %v585
  %v767 = vunpack.c.h.b16 %v585
  %v768 = vunpack.c.l.b16 %v586
  %v769 = vunpack.c.h.b16 %v586
  %v770 = vunpack.c.l.b16 %v587
  %v771 = vunpack.c.h.b16 %v587
  %v772 = vunpack.c.l.b16 %v588
  %v773 = vunpack.c.h.b16 %v588
  %v774 = vunpack.c.l.b16 %v589
  %v775 = vunpack.c.h.b16 %v589
  %v776 = vunpack.c.l.b16 %v590
  %v777 = vunpack.c.h.b16 %v590
  %v778 = vunpack.c.l.b16 %v591
  %v779 = vunpack.c.h.b16 %v591
  %v780 = vunpack.c.l.b16 %v592
  %v781 = vunpack.c.h.b16 %v592
  %v782 = vunpack.c.l.b16 %v593
  %v783 = vunpack.c.h.b16 %v593
  %v784 = vunpack.c.l.b16 %v594
  %v785 = vunpack.c.h.b16 %v594
  %v786 = vunpack.c.l.b16 %v595
  %v787 = vunpack.c.h.b16 %v595
  %v788 = vunpack.c.l.b16 %v596
  %v789 = vunpack.c.h.b16 %v596
  %v790 = vunpack.c.l.b16 %v597
  %v791 = vunpack.c.h.b16 %v597
  %v792 = vunpack.c.l.b16 %v598
  %v793 = vunpack.c.h.b16 %v598
  %v794 = vunpack.c.l.b16 %v599
  %v795 = vunpack.c.h.b16 %v599
  %v796 = vunpack.c.l.b16 %v600
  %v797 = vunpack.c.h.b16 %v600
  %v798 = vunpack.c.l.b16 %v601
  %v799 = vunpack.c.h.b16 %v601
  %v800 = vunpack.c.l.b16 %v602
  %v801 = vunpack.c.h.b16 %v602
  %v802 = vunpack.c.l.b16 %v603
  %v803 = vunpack.c.h.b16 %v603
  %v804 = vunpack.c.l.b16 %v604
  %v805 = vunpack.c.h.b16 %v604
  %v806 = vunpack.c.l.b16 %v605
  %v807 = vunpack.c.h.b16 %v605
  %v808 = vunpack.c.l.b16 %v606
  %v809 = vunpack.c.h.b16 %v606
  %v810 = vunpack.c.l.b16 %v607
  %v811 = vunpack.c.h.b16 %v607
  %v812 = vunpack.c.l.b16 %v608
  %v813 = vunpack.c.h.b16 %v608
  %v814 = vunpack.c.l.b16 %v609
  %v815 = vunpack.c.h.b16 %v609
  %v816 = vunpack.c.l.b16 %v610
  %v817 = vunpack.c.h.b16 %v610
  %v818 = vunpack.c.l.b16 %v611
  %v819 = vunpack.c.h.b16 %v611
  %v820 = vunpack.c.l.b16 %v612
  %v821 = vunpack.c.h.b16 %v612
  %v822 = vunpack.c.l.b16 %v613
  %v823 = vunpack.c.h.b16 %v613
  %v824 = vunpack.c.l.b16 %v614
  %v825 = vunpack.c.h.b16 %v614
  %v826 = vunpack.c.l.b16 %v615
  %v827 = vunpack.c.h.b16 %v615
  %v828 = vunpack.c.l.b16 %v616
  %v829 = vunpack.c.h.b16 %v616
  %v830 = vunpack.c.l.b16 %v617
  %v831 = vunpack.c.h.b16 %v617
  %v832 = vunpack.c.l.b16 %v618
  %v833 = vunpack.c.h.b16 %v618
  %v834 = vunpack.c.l.b16 %v619
  %v835 = vunpack.c.h.b16 %v619
  %v836 = vunpack.c.l.b16 %v620
  %v837 = vunpack.c.h.b16 %v620
  %v838 = vunpack.c.l.b16 %v621
  %v839 = vunpack.c.h.b16 %v621
  %v840 = vunpack.c.l.b16 %v622
  %v841 = vunpack.c.h.b16 %v622
  %v842 = vunpack.c.l.b16 %v623
  %v843 = vunpack.c.h.b16 %v623
  %v844 = vunpack.c.l.b16 %v624
  %v845 = vunpack.c.h.b16 %v624
  %v846 = vunpack.c.l.b16 %v625
  %v847 = vunpack.c.h.b16 %v625
  %v848 = vunpack.c.l.b16 %v626
  %v849 = vunpack.c.h.b16 %v626
  %v850 = vunpack.c.l.b16 %v627
  %v851 = vunpack.c.h.b16 %v627
  %v852 = vunpack.c.l.b16 %v628
  %v853 = vunpack.c.h.b16 %v628
  %v854 = vunpack.c.l.b16 %v629
  %v855 = vunpack.c.h.b16 %v629
  %v856 = vunpack.c.l.b16 %v630
  %v857 = vunpack.c.h.b16 %v630
  %v858 = vunpack.c.l.b16 %v631
  %v859 = vunpack.c.h.b16 %v631
  %v860 = vpack.c.b16 %v718, %v716
  %v861 = vpack.c.b16 %v719, %v717
  %v862 = vpack.c.b16 %v722, %v720
  %v863 = vpack.c.b16 %v723, %v721
  %v864 = vpack.c.b16 %v726, %v724
  %v865 = vpack.c.b16 %v727, %v725
  %v866 = vpack.c.b16 %v730, %v728
  %v867 = vpack.c.b16 %v731, %v729
  %v868 = vpack.c.b16 %v734, %v732
  %v869 = vpack.c.b16 %v735, %v733
  %v870 = vpack.c.b16 %v738, %v736
  %v871 = vpack.c.b16 %v739, %v737
  %v872 = vpack.c.b16 %v742, %v740
  %v873 = vpack.c.b16 %v743, %v741
  %v874 = vpack.c.b16 %v746, %v744
  %v875 = vpack.c.b16 %v747, %v745
  %v876 = vpack.c.b16 %v750, %v748
  %v877 = vpack.c.b16 %v751, %v749
  %v878 = vpack.c.b16 %v754, %v752
  %v879 = vpack.c.b16 %v755, %v753
  %v880 = vpack.c.b16 %v758, %v756
  %v881 = vpack.c.b16 %v759, %v757
  %v882 = vpack.c.b16 %v762, %v760
  %v883 = vpack.c.b16 %v763, %v761
  %v884 = vpack.c.b16 %v766, %v764
  %v885 = vpack.c.b16 %v767, %v765
  %v886 = vpack.c.b16 %v770, %v768
  %v887 = vpack.c.b16 %v771, %v769
  %v888 = vpack.c.b16 %v774, %v772
  %v889 = vpack.c.b16 %v775, %v773
  %v890 = vpack.c.b16 %v778, %v776
  %v891 = vpack.c.b16 %v779, %v777
  %v892 = vpack.c.b16 %v782, %v780
  %v893 = vpack.c.b16 %v783, %v781
  %v894 = vpack.c.b16 %v786, %v784
  %v895 = vpack.c.b16 %v787, %v785
  %v896 = vpack.c.b16 %v790, %v788
  %v897 = vpack.c.b16 %v791, %v789
  %v898 = vpack.c.b16 %v794, %v792
  %v899 = vpack.c.b16 %v795, %v793
  %v900 = vpack.c.b16 %v798, %v796
  %v901 = vpack.c.b16 %v799, %v797
  %v902 = vpack.c.b16 %v802, %v800
  %v903 = vpack.c.b16 %v803, %v801
  %v904 = vpack.c.b16 %v806, %v804
  %v905 = vpack.c.b16 %v807, %v805
  %v906 = vpack.c.b16 %v810, %v808
  %v907 = vpack.c.b16 %v811, %v809
  %v908 = vpack.c.b16 %v814, %v812
  %v909 = vpack.c.b16 %v815, %v813
  %v910 = vpack.c.b16 %v818, %v816
  %v911 = vpack.c.b16 %v819, %v817
  %v912 = vpack.c.b16 %v822, %v820
  %v913 = vpack.c.b16 %v823, %v821
  %v914 = vpack.c.b16 %v826, %v824
  %v915 = vpack.c.b16 %v827, %v825
  %v916 = vpack.c.b16 %v830, %v828
  %v917 = vpack.c.b16 %v831, %v829
  %v918 = vpack.c.b16 %v834, %v832
  %v919 = vpack.c.b16 %v835, %v833
  %v920 = vpack.c.b16 %v838, %v836
  %v921 = vpack.c.b16 %v839, %v837
  %v922 = vpack.c.b16 %v842, %v840
  %v923 = vpack.c.b16 %v843, %v841
  %v924 = vpack.c.b16 %v846, %v844
  %v925 = vpack.c.b16 %v847, %v845
  %v926 = vpack.c.b16 %v850, %v848
  %v927 = vpack.c.b16 %v851, %v849
  %v928 = vpack.c.b16 %v854, %v852
  %v929 = vpack.c.b16 %v855, %v853
  %v930 = vpack.c.b16 %v858, %v856
  %v931 = vpack.c.b16 %v859, %v857
  %vm1004 = vcmask 523264
  %v1006 = vsel %vm1004, %v559, 0
  %1008 = vmatprep.subr.bf16.mxu0 %v875
  %1009 = vmatpush1.bf16.msra.mxu0 %v874
  %1010 = vmatprep.subr.bf16.mxu0 %v873
  %1011 = vmatpush1.bf16.msra.mxu0 %v872
  %1012 = vmatprep.subr.bf16.mxu0 %v871
  %1013 = vmatpush1.bf16.msra.mxu0 %v870
  %1014 = vmatprep.subr.bf16.mxu0 %v869
  %1015 = vmatpush1.bf16.msra.mxu0 %v868
  %1016 = vmatprep.subr.bf16.mxu0 %v867
  %1017 = vmatpush1.bf16.msra.mxu0 %v866
  %1018 = vmatprep.subr.bf16.mxu0 %v865
  %1019 = vmatpush1.bf16.msra.mxu0 %v864
  %1020 = vmatprep.subr.bf16.mxu0 %v863
  %1021 = vmatpush1.bf16.msra.mxu0 %v862
  %1022 = vmatprep.subr.bf16.mxu0 %v861
  %1023 = vmatpush1.bf16.msra.mxu0 %v860
  %1024 = vmatprep.subr.bf16.mxu0 %v891
  %1025 = vmatpush2.bf16.msra.mxu0 %v890
  %1026 = vmatprep.subr.bf16.mxu0 %v889
  %1027 = vmatpush2.bf16.msra.mxu0 %v888
  %1028 = vmatprep.subr.bf16.mxu0 %v887
  %1029 = vmatpush2.bf16.msra.mxu0 %v886
  %1030 = vmatprep.subr.bf16.mxu0 %v885
  %1031 = vmatpush2.bf16.msra.mxu0 %v884
  %1032 = vmatprep.subr.bf16.mxu0 %v883
  %1033 = vmatpush2.bf16.msra.mxu0 %v882
  %1034 = vmatprep.subr.bf16.mxu0 %v881
  %1035 = vmatpush2.bf16.msra.mxu0 %v880
  %1036 = vmatprep.subr.bf16.mxu0 %v879
  %1037 = vmatpush2.bf16.msra.mxu0 %v878
  %1038 = vmatprep.subr.bf16.mxu0 %v877
  %1039 = vmatpush2.bf16.msra.mxu0 %v876
  %1040 = vmatprep.mubr.bf16.mxu0 %v556
  %1041 = vmatmul.mubr.bf16.gmra.mxu0 %v555
  %v1042 = vpop.f32.mrf.mxu0
  %v1043 = vadd.f32 %v637, %v1042
  %v1044 = vpop.f32.mrf.mxu0
  %v1045 = vadd.f32 %v641, %v1044
  %v1046 = vpop.f32.mrf.mxu0
  %v1047 = vpop.f32.mrf.mxu0
  %1048 = vdwg.mxu0
  %1049 = vmatprep.subr.bf16.mxu0 %v907
  %1050 = vmatpush1.bf16.msra.mxu0 %v906
  %1051 = vmatprep.subr.bf16.mxu0 %v905
  %1052 = vmatpush1.bf16.msra.mxu0 %v904
  %1053 = vmatprep.subr.bf16.mxu0 %v903
  %1054 = vmatpush1.bf16.msra.mxu0 %v902
  %1055 = vmatprep.subr.bf16.mxu0 %v901
  %1056 = vmatpush1.bf16.msra.mxu0 %v900
  %1057 = vmatprep.subr.bf16.mxu0 %v899
  %1058 = vmatpush1.bf16.msra.mxu0 %v898
  %1059 = vmatprep.subr.bf16.mxu0 %v897
  %1060 = vmatpush1.bf16.msra.mxu0 %v896
  %1061 = vmatprep.subr.bf16.mxu0 %v895
  %1062 = vmatpush1.bf16.msra.mxu0 %v894
  %1063 = vmatprep.subr.bf16.mxu0 %v893
  %1064 = vmatpush1.bf16.msra.mxu0 %v892
  %1065 = vmatprep.subr.bf16.mxu0 %v923
  %1066 = vmatpush2.bf16.msra.mxu0 %v922
  %1067 = vmatprep.subr.bf16.mxu0 %v921
  %1068 = vmatpush2.bf16.msra.mxu0 %v920
  %1069 = vmatprep.subr.bf16.mxu0 %v919
  %1070 = vmatpush2.bf16.msra.mxu0 %v918
  %1071 = vmatprep.subr.bf16.mxu0 %v917
  %1072 = vmatpush2.bf16.msra.mxu0 %v916
  %1073 = vmatprep.subr.bf16.mxu0 %v915
  %1074 = vmatpush2.bf16.msra.mxu0 %v914
  %1075 = vmatprep.subr.bf16.mxu0 %v913
  %1076 = vmatpush2.bf16.msra.mxu0 %v912
  %1077 = vmatprep.subr.bf16.mxu0 %v911
  %1078 = vmatpush2.bf16.msra.mxu0 %v910
  %1079 = vmatprep.subr.bf16.mxu0 %v909
  %1080 = vmatpush2.bf16.msra.mxu0 %v908
  %1081 = vmatprep.mubr.bf16.mxu0 %v558
  %1082 = vmatmul.mubr.bf16.gmra.mxu0 %v557
  %v1083 = vpop.f32.mrf.mxu0
  %v1084 = vadd.f32 %v1043, %v1083
  %v1085 = vpop.f32.mrf.mxu0
  %v1086 = vadd.f32 %v1045, %v1085
  %v1087 = vpop.f32.mrf.mxu0
  %v1088 = vpop.f32.mrf.mxu0
  %1089 = vdwg.mxu0
  %1090 = vmatprep.subr.bf16.mxu0 0
  %1091 = vmatpush1.bf16.msra.mxu0 0
  %1092 = vmatprep.subr.bf16.mxu0 0
  %1093 = vmatpush1.bf16.msra.mxu0 0
  %1094 = vmatprep.subr.bf16.mxu0 0
  %1095 = vmatpush1.bf16.msra.mxu0 0
  %1096 = vmatprep.subr.bf16.mxu0 0
  %1097 = vmatpush1.bf16.msra.mxu0 0
  %1098 = vmatprep.subr.bf16.mxu0 %v931
  %1099 = vmatpush1.bf16.msra.mxu0 %v930
  %1100 = vmatprep.subr.bf16.mxu0 %v929
  %1101 = vmatpush1.bf16.msra.mxu0 %v928
  %1102 = vmatprep.subr.bf16.mxu0 %v927
  %1103 = vmatpush1.bf16.msra.mxu0 %v926
  %1104 = vmatprep.subr.bf16.mxu0 %v925
  %1105 = vmatpush1.bf16.msra.mxu0 %v924
  %1106 = vmatprep.subr.bf16.mxu0 0
  %1107 = vmatpush2.bf16.msra.mxu0 0
  %1108 = vmatprep.subr.bf16.mxu0 0
  %1109 = vmatpush2.bf16.msra.mxu0 0
  %1110 = vmatprep.subr.bf16.mxu0 0
  %1111 = vmatpush2.bf16.msra.mxu0 0
  %1112 = vmatprep.subr.bf16.mxu0 0
  %1113 = vmatpush2.bf16.msra.mxu0 0
  %1114 = vmatprep.subr.bf16.mxu0 0
  %1115 = vmatpush2.bf16.msra.mxu0 0
  %1116 = vmatprep.subr.bf16.mxu0 0
  %1117 = vmatpush2.bf16.msra.mxu0 0
  %1118 = vmatprep.subr.bf16.mxu0 0
  %1119 = vmatpush2.bf16.msra.mxu0 0
  %1120 = vmatprep.subr.bf16.mxu0 0
  %1121 = vmatpush2.bf16.msra.mxu0 0
  %1122 = vmatprep.mubr.bf16.mxu0 0
  %1123 = vmatmul.mubr.bf16.gmra.mxu0 %v1006
  %v1124 = vpop.f32.mrf.mxu0
  %v1125 = vadd.f32 %v1084, %v1124
  %v1126 = vpop.f32.mrf.mxu0
  %v1127 = vadd.f32 %v1086, %v1126
  %v1128 = vpop.f32.mrf.mxu0
  %v1129 = vpop.f32.mrf.mxu0
  %1130 = vdwg.mxu0
  %v1131 = vmax.f32 %v1125, 0.0
  %v1132 = vmax.f32 %v1127, 0.0
  %v1133 = vpack.c.bf16 %v1131, %v1131
  %v1134 = vpack.c.bf16 %v1132, %v1132
  %v1135 = vld [vmem:[%s5] sm:$0xf]
  %v1136 = vld [vmem:[%s5 + $0x4] sm:$0xf]
  %v1137 = vld [vmem:[%s5 + $0x8] sm:$0xf]
  %v1138 = vld [vmem:[%s5 + $0xc] sm:$0xf]
  %v1139 = vld [vmem:[%s5 + $0x10] sm:$0xf]
  %v1140 = vld [vmem:[%s5 + $0x14] sm:$0xf]
  %v1141 = vld [vmem:[%s5 + $0x18] sm:$0xf]
  %v1142 = vld [vmem:[%s5 + $0x1c] sm:$0xf]
  %v1143 = vld [vmem:[%s5 + $0x20] sm:$0xf]
  %v1144 = vld [vmem:[%s5 + $0x24] sm:$0xf]
  %v1145 = vld [vmem:[%s5 + $0x28] sm:$0xf]
  %v1146 = vld [vmem:[%s5 + $0x2c] sm:$0xf]
  %v1147 = vld [vmem:[%s5 + $0x30] sm:$0xf]
  %v1148 = vld [vmem:[%s5 + $0x34] sm:$0xf]
  %v1149 = vld [vmem:[%s5 + $0x38] sm:$0xf]
  %v1150 = vld [vmem:[%s5 + $0x3c] sm:$0xf]
  %v1151 = vld [vmem:[%s5 + $0x40] sm:$0xf]
  %v1152 = vld [vmem:[%s5 + $0x44] sm:$0xf]
  %v1153 = vld [vmem:[%s5 + $0x48] sm:$0xf]
  %v1154 = vld [vmem:[%s5 + $0x4c] sm:$0xf]
  %v1155 = vld [vmem:[%s5 + $0x50] sm:$0xf]
  %v1156 = vld [vmem:[%s5 + $0x54] sm:$0xf]
  %v1157 = vld [vmem:[%s5 + $0x58] sm:$0xf]
  %v1158 = vld [vmem:[%s5 + $0x5c] sm:$0xf]
  %v1159 = vld [vmem:[%s6] sm:$0x1]
  %v1161 = vlaneseq
  %v1162 = vshrl.u32 %v1161, 7
  %v1163 = vsub.s32 0, %v1162
  %v1164 = vrot.slane %v1159, %v1163
  %v1190 = vunpack.c.l.b16 %v1135
  %v1191 = vunpack.c.l.b16 %v1136
  %v1192 = vunpack.c.l.b16 %v1137
  %v1193 = vunpack.c.l.b16 %v1138
  %v1194 = vunpack.c.l.b16 %v1139
  %v1195 = vunpack.c.l.b16 %v1140
  %v1196 = vunpack.c.l.b16 %v1141
  %v1197 = vunpack.c.l.b16 %v1142
  %v1198 = vunpack.c.l.b16 %v1143
  %v1199 = vunpack.c.l.b16 %v1144
  %v1200 = vunpack.c.l.b16 %v1145
  %v1201 = vunpack.c.l.b16 %v1146
  %v1202 = vunpack.c.l.b16 %v1147
  %v1203 = vunpack.c.l.b16 %v1148
  %v1204 = vunpack.c.l.b16 %v1149
  %v1205 = vunpack.c.l.b16 %v1150
  %v1206 = vunpack.c.l.b16 %v1151
  %v1207 = vunpack.c.l.b16 %v1152
  %v1208 = vunpack.c.l.b16 %v1153
  %v1209 = vunpack.c.l.b16 %v1154
  %v1210 = vunpack.c.l.b16 %v1155
  %v1211 = vunpack.c.l.b16 %v1156
  %v1212 = vunpack.c.l.b16 %v1157
  %v1213 = vunpack.c.l.b16 %v1158
  %v1214 = vpack.c.b16 %v1191, %v1190
  %v1215 = vpack.c.b16 %v1193, %v1192
  %v1216 = vpack.c.b16 %v1195, %v1194
  %v1217 = vpack.c.b16 %v1197, %v1196
  %v1218 = vpack.c.b16 %v1199, %v1198
  %v1219 = vpack.c.b16 %v1201, %v1200
  %v1220 = vpack.c.b16 %v1203, %v1202
  %v1221 = vpack.c.b16 %v1205, %v1204
  %v1222 = vpack.c.b16 %v1207, %v1206
  %v1223 = vpack.c.b16 %v1209, %v1208
  %v1224 = vpack.c.b16 %v1211, %v1210
  %v1225 = vpack.c.b16 %v1213, %v1212
  %v1239 = vsel %vm1004, %v1134, 0
  %1241 = vmatprep.subr.bf16.mxu0 0
  %1242 = vmatpush1.bf16.msra.mxu0 %v1221
  %1243 = vmatprep.subr.bf16.mxu0 0
  %1244 = vmatpush1.bf16.msra.mxu0 %v1220
  %1245 = vmatprep.subr.bf16.mxu0 0
  %1246 = vmatpush1.bf16.msra.mxu0 %v1219
  %1247 = vmatprep.subr.bf16.mxu0 0
  %1248 = vmatpush1.bf16.msra.mxu0 %v1218
  %1249 = vmatprep.subr.bf16.mxu0 0
  %1250 = vmatpush1.bf16.msra.mxu0 %v1217
  %1251 = vmatprep.subr.bf16.mxu0 0
  %1252 = vmatpush1.bf16.msra.mxu0 %v1216
  %1253 = vmatprep.subr.bf16.mxu0 0
  %1254 = vmatpush1.bf16.msra.mxu0 %v1215
  %1255 = vmatprep.subr.bf16.mxu0 0
  %1256 = vmatpush1.bf16.msra.mxu0 %v1214
  %1257 = vmatprep.subr.bf16.mxu0 0
  %1258 = vmatpush2.bf16.msra.mxu0 0
  %1259 = vmatprep.subr.bf16.mxu0 0
  %1260 = vmatpush2.bf16.msra.mxu0 0
  %1261 = vmatprep.subr.bf16.mxu0 0
  %1262 = vmatpush2.bf16.msra.mxu0 0
  %1263 = vmatprep.subr.bf16.mxu0 0
  %1264 = vmatpush2.bf16.msra.mxu0 0
  %1265 = vmatprep.subr.bf16.mxu0 0
  %1266 = vmatpush2.bf16.msra.mxu0 %v1225
  %1267 = vmatprep.subr.bf16.mxu0 0
  %1268 = vmatpush2.bf16.msra.mxu0 %v1224
  %1269 = vmatprep.subr.bf16.mxu0 0
  %1270 = vmatpush2.bf16.msra.mxu0 %v1223
  %1271 = vmatprep.subr.bf16.mxu0 0
  %1272 = vmatpush2.bf16.msra.mxu0 %v1222
  %1273 = vmatprep.mubr.bf16.mxu0 %v1239
  %1274 = vmatmul.mubr.bf16.gmra.mxu0 %v1133
  %v1275 = vpop.f32.mrf.mxu0
  %v1276 = vadd.f32 %v1164, %v1275
  %v1277 = vpop.f32.mrf.mxu0
  %v1278 = vpop.f32.mrf.mxu0
  %v1279 = vpop.f32.mrf.mxu0
  %1280 = vdwg.mxu0
  %1281 = vst [vmem:[%s7] sm:$0xff] %v1276
  // Predicated region
  $region30: #{rnd_buffer_encoder_forward.1} parent=0 // pred_check
    _
  $region31: #{rnd_buffer_encoder_forward.1} parent=0 // pred_check_branch
    %1283 = sbr.rel (0) target = $region33
  $region32: #{rnd_buffer_encoder_forward.1} parent=0 // pred_region
    _
  $region33: #{rnd_buffer_encoder_forward.1} parent=0 // pred_fallthru
    _
  // Predicated region
  $region34: #{rnd_buffer_encoder_forward.1} parent=0 // pred_check
    _
  $region35: #{rnd_buffer_encoder_forward.1} parent=0 // pred_check_branch
    %1285 = sbr.rel (0) target = $region37
  $region36: #{rnd_buffer_encoder_forward.1} parent=0 // pred_region
    _
  $region37: #{rnd_buffer_encoder_forward.1} parent=0 // pred_fallthru
    _

</llo_original>
